<compile_context>
chip_gen: v6e
topology: v6e:2x2x1
jax: 0.10.0
libtpu: 0.0.40
codegen_flags: <defaults>
</compile_context>

<pallas_src>
import functools

import jax
import jax.numpy as jnp
from jax.experimental import pallas as pl
from jax.experimental.pallas import tpu as pltpu

_LANES = 128


# ----------------------------------------------------------------------------
# Pallas kernel: streaming sum of squared differences -> mean at the last step
# ----------------------------------------------------------------------------
def _mse_kernel(yt_ref, yp_ref, o_ref, *, inv_n):
    step = pl.program_id(0)

    @pl.when(step == 0)
    def _():
        o_ref[0, 0] = jnp.float32(0.0)

    d = yp_ref[...] - yt_ref[...]            # VPU, full-width 128-lane vregs
    o_ref[0, 0] += jnp.sum(d * d)            # tile partial sum -> SMEM scalar

    @pl.when(step == pl.num_programs(0) - 1)
    def _():
        o_ref[0, 0] = o_ref[0, 0] * inv_n    # divide by element count -> mean


# ----------------------------------------------------------------------------
# Wrapper: layout plumbing only (flatten, pad, lane-dense reshape)
# ----------------------------------------------------------------------------
def mse_loss(y_true, y_pred, *, block_rows=512):
    """MSE(y_pred, y_true) == mean((y_pred - y_true)**2). Returns a 0-d f32."""
    assert y_true.shape == y_pred.shape, (y_true.shape, y_pred.shape)
    n = int(y_true.size)

    # Flatten to lane-dense (rows, 128); zero-pad the tail.  Padded positions
    # are zero in BOTH operands, so they contribute exactly 0 to the sum.
    yt = y_true.reshape(-1).astype(jnp.float32)
    yp = y_pred.reshape(-1).astype(jnp.float32)

    rows = pl.cdiv(n, _LANES)
    block_rows = max(8, min(block_rows, rows))
    block_rows = ((block_rows + 7) // 8) * 8          # sublane multiple of 8
    grid = pl.cdiv(rows, block_rows)
    padded_rows = grid * block_rows
    pad = padded_rows * _LANES - n
    if pad:
        yt = jnp.pad(yt, (0, pad))
        yp = jnp.pad(yp, (0, pad))
    yt = yt.reshape(padded_rows, _LANES)
    yp = yp.reshape(padded_rows, _LANES)

    kernel = functools.partial(_mse_kernel, inv_n=1.0 / n)
    out = pl.pallas_call(
        kernel,
        out_shape=jax.ShapeDtypeStruct((1, 1), jnp.float32),
        grid=(grid,),
        in_specs=[
            pl.BlockSpec((block_rows, _LANES), lambda i: (i, 0)),
            pl.BlockSpec((block_rows, _LANES), lambda i: (i, 0)),
        ],
        # Scalar accumulator stays resident in SMEM across all grid steps;
        # written back to HBM once at the end of the kernel.
        out_specs=pl.BlockSpec(memory_space=pltpu.MemorySpace.SMEM),
        compiler_params=pltpu.CompilerParams(
            dimension_semantics=("arbitrary",),       # reduction axis
        ),
    )(yt, yp)
    return out[0, 0]


def custom_loss_forward(y_true, y_pred, threshold=0.01):
    # `threshold` is stored but unused in the reference forward(); kept for
    # signature parity with the PyTorch module.
    del threshold
    return mse_loss(y_true, y_pred)


if __name__ == "__main__":
    key = jax.random.PRNGKey(0)
    k1, k2 = jax.random.split(key)
    # Small image-style inputs: batch=2, channels=4, spatial=16x16.
    y_true = jax.random.normal(k1, (2, 4, 16, 16), dtype=jnp.float32)
    y_pred = jax.random.normal(k2, (2, 4, 16, 16), dtype=jnp.float32)

    loss = jax.jit(custom_loss_forward)(y_true, y_pred)
    jax.block_until_ready(loss)

    ref = jnp.mean((y_pred - y_true) ** 2)
    assert loss.shape == (), loss.shape
    assert bool(jnp.isfinite(loss))
    assert bool(jnp.allclose(loss, ref, rtol=1e-5, atol=1e-6)), (
        float(loss), float(ref))
    print("KERNEL_OK")
</pallas_src>

<mosaic_0001>
module attributes {stable_mosaic.version = 11 : i64} {
  func.func @_mse_kernel(%arg0: i32, %arg1: memref<16x128xf32, #tpu.memory_space<vmem>>, %arg2: memref<16x128xf32, #tpu.memory_space<vmem>>, %arg3: memref<1x1xf32, #tpu.memory_space<smem>>) attributes {dimension_semantics = [#tpu.dimension_semantics<arbitrary>], iteration_bounds = array<i64: 1>, scalar_prefetch = 0 : i64, scratch_operands = 0 : i64, tpu.core_type = #tpu.core_type<tc>, window_params = [{transform_indices = @transform_0, window_bounds = array<i64: 16, 128>}, {transform_indices = @transform_1, window_bounds = array<i64: 16, 128>}, {transform_indices = @transform_2, window_bounds = array<i64: 1, 1>}]} {
    %c0_i32 = arith.constant 0 : i32
    %0 = arith.cmpi eq, %arg0, %c0_i32 : i32
    %1 = arith.extui %0 : i1 to i32
    %c0_i32_0 = arith.constant 0 : i32
    %2 = arith.cmpi ne, %1, %c0_i32_0 : i32
    scf.if %2 {
      %cst_10 = arith.constant 0.000000e+00 : f32
      %c0_11 = arith.constant 0 : index
      %c0_12 = arith.constant 0 : index
      %17 = memref.load %arg3[%c0_11, %c0_12] : memref<1x1xf32, #tpu.memory_space<smem>>
      memref.store %cst_10, %arg3[%c0_11, %c0_12] : memref<1x1xf32, #tpu.memory_space<smem>>
    } else {
    }
    %c0 = arith.constant 0 : index
    %c0_1 = arith.constant 0 : index
    %3 = vector.load %arg2[%c0, %c0_1] : memref<16x128xf32, #tpu.memory_space<vmem>>, vector<16x128xf32>
    %c0_2 = arith.constant 0 : index
    %c0_3 = arith.constant 0 : index
    %4 = vector.load %arg1[%c0_2, %c0_3] : memref<16x128xf32, #tpu.memory_space<vmem>>, vector<16x128xf32>
    %5 = arith.subf %3, %4 : vector<16x128xf32>
    %c0_4 = arith.constant 0 : index
    %c0_5 = arith.constant 0 : index
    %6 = memref.load %arg3[%c0_4, %c0_5] : memref<1x1xf32, #tpu.memory_space<smem>>
    %7 = arith.mulf %5, %5 : vector<16x128xf32>
    %8 = vector.shape_cast %7 : vector<16x128xf32> to vector<1x16x128xf32>
    %cst = arith.constant dense<0.000000e+00> : vector<1xf32>
    %9 = vector.multi_reduction <add>, %8, %cst [1, 2] : vector<1x16x128xf32> to vector<1xf32>
    %10 = vector.shape_cast %9 : vector<1xf32> to vector<1x1x1xf32>
    %11 = vector.extract %10[0, 0, 0] : f32 from vector<1x1x1xf32>
    %12 = arith.addf %6, %11 : f32
    %c0_6 = arith.constant 0 : index
    %c0_7 = arith.constant 0 : index
    %13 = memref.load %arg3[%c0_6, %c0_7] : memref<1x1xf32, #tpu.memory_space<smem>>
    memref.store %12, %arg3[%c0_6, %c0_7] : memref<1x1xf32, #tpu.memory_space<smem>>
    %c0_i32_8 = arith.constant 0 : i32
    %14 = arith.cmpi eq, %arg0, %c0_i32_8 : i32
    %15 = arith.extui %14 : i1 to i32
    %c0_i32_9 = arith.constant 0 : i32
    %16 = arith.cmpi ne, %15, %c0_i32_9 : i32
    scf.if %16 {
      %c0_10 = arith.constant 0 : index
      %c0_11 = arith.constant 0 : index
      %17 = memref.load %arg3[%c0_10, %c0_11] : memref<1x1xf32, #tpu.memory_space<smem>>
      %cst_12 = arith.constant 4.8828125E-4 : f32
      %18 = arith.mulf %17, %cst_12 : f32
      %c0_13 = arith.constant 0 : index
      %c0_14 = arith.constant 0 : index
      %19 = memref.load %arg3[%c0_13, %c0_14] : memref<1x1xf32, #tpu.memory_space<smem>>
      memref.store %18, %arg3[%c0_13, %c0_14] : memref<1x1xf32, #tpu.memory_space<smem>>
    } else {
    }
    return
  }
  func.func @transform_0(%arg0: i32) -> (i32, i32) {
    %c0_i32 = arith.constant 0 : i32
    %c0_i32_0 = arith.constant 0 : i32
    return %arg0, %c0_i32 : i32, i32
  }
  func.func @transform_1(%arg0: i32) -> (i32, i32) {
    %c0_i32 = arith.constant 0 : i32
    %c0_i32_0 = arith.constant 0 : i32
    return %arg0, %c0_i32 : i32, i32
  }
  func.func @transform_2(%arg0: i32) -> (i32, i32) {
    %c0_i32 = arith.constant 0 : i32
    %c0_i32_0 = arith.constant 0 : i32
    %c0_i32_1 = arith.constant 0 : i32
    return %c0_i32, %c0_i32_0 : i32, i32
  }
}

</mosaic_0001>

<llo_original>
// kernel: custom_loss_forward.1
$region0: #{custom_loss_forward.1}
  #allocation0 [shape = 'u32[]', space=smem, size = 0x4, offset = 0x4, fixed_abs, tag = 'smem constant byte address 0x4 - core index']
  #allocation1 [shape = 'u32[144,128]{1,0:T(1,128)}', space=vmem, size = 0x12000, scoped, tag = 'internal scratch']
  %s0 = inlined_call_operand.vmem [shape: f32[16,128], index: 0, kind: input, shape index: {}]
  %s1 = inlined_call_operand.vmem [shape: f32[16,128], index: 1, kind: input, shape index: {}]
  %s2 = inlined_call_operand.hbm [shape: f32[1,1], index: 2, kind: output, shape index: {}]
  %s3 = sld [smem:[#allocation0]]
  $region26: #{custom_loss_forward.1} parent=0
    _
  %s5 = ssub.s32 1, %s3
  %s6 = scalar_select 0, %s5, %s3
  $region1: #{custom_loss_forward.1} parent=0
    #allocation2 [shape = 'u8[512]{0}', space=smem, size = 0x200, scoped, tag = 'output window, operand 0, single buffered']
    #allocation3 [shape = 's32[1]{0}', space=sflag, size = 0x4, scoped, tag = 'scoped memory for custom_loss_forward.1']
    %7 = vsyncpa [#allocation3], 0
    // Predicated region
    $region2: #{custom_loss_forward.1} parent=1 // pred_check
      _
    $region3: #{custom_loss_forward.1} parent=1 // pred_check_branch
      %9 = sbr.rel (0) target = $region5
    $region4: #{custom_loss_forward.1} parent=1 // pred_region
      _
    $region5: #{custom_loss_forward.1} parent=1 // pred_fallthru
      _
    // Predicated region
    $region6: #{custom_loss_forward.1} parent=1 // pred_check
      _
    $region7: #{custom_loss_forward.1} parent=1 // pred_check_branch
      %11 = sbr.rel (0) target = $region9
    $region8: #{custom_loss_forward.1} parent=1 // pred_region
      _
    $region9: #{custom_loss_forward.1} parent=1 // pred_fallthru
      _
    %p12 = scmp.eq.s32.totalorder 0, 0
    // Predicated region
    $region10: #{custom_loss_forward.1} parent=1 // pred_check
      %p13 = pneg %p12
    $region11: #{custom_loss_forward.1} parent=1 // pred_check_branch
      %15 = sbr.rel (%p13) target = $region13
    $region12: #{custom_loss_forward.1} parent=1 // pred_region
      %s16 = scalar_lea.smem [#allocation2], 0
      %17 = sst [smem:[%s16]] 0.0
    $region13: #{custom_loss_forward.1} parent=1 // pred_fallthru
      _
    %v18 = vld [vmem:[%s1] sm:$0xff]
    %v19 = vld [vmem:[%s1 + $0x8] sm:$0xff]
    %v20 = vld [vmem:[%s0] sm:$0xff]
    %v21 = vld [vmem:[%s0 + $0x8] sm:$0xff]
    %v22 = vsub.f32 %v18, %v20
    %v23 = vsub.f32 %v19, %v21
    %s24 = sld [smem:[#allocation2]]
    %v25 = vmul.f32 %v22, %v22
    %v26 = vmul.f32 %v23, %v23
    %v27 = vadd.f32 %v25, %v26
    %28 = vadd.xlane.f32.xlu0 %v27
    %v29 = vpop.xlane.xlu0 %28
    %v30 = vrot.slane %v29, 4
    %v31 = vadd.f32 %v29, %v30
    %v32 = vrot.slane %v31, 2
    %v33 = vadd.f32 %v31, %v32
    %v34 = vrot.slane %v33, 1
    %v35 = vadd.f32 %v33, %v34
    %s36 = vtos %v35
    %s37 = sadd.f32 %s24, %s36
    %s38 = scalar_lea.smem [#allocation2], 0
    %39 = sst [smem:[%s38]] %s37
    // Predicated region
    $region14: #{custom_loss_forward.1} parent=1 // pred_check
      %p40 = pneg %p12
    $region15: #{custom_loss_forward.1} parent=1 // pred_check_branch
      %42 = sbr.rel (%p40) target = $region17
    $region16: #{custom_loss_forward.1} parent=1 // pred_region
      %s43 = sld [smem:[#allocation2]]
      %s44 = smul.f32 %s43, 0.00048828125
      %45 = sst [smem:[%s38]] %s44
    $region17: #{custom_loss_forward.1} parent=1 // pred_fallthru
      _
    // Predicated region
    $region18: #{custom_loss_forward.1} parent=1 // pred_check
      _
    $region19: #{custom_loss_forward.1} parent=1 // pred_check_branch
      %47 = sbr.rel (0) target = $region21
    $region20: #{custom_loss_forward.1} parent=1 // pred_region
      %s49 = ssub.s32 16, 16
      %50 = vsyncadd [#allocation3], %s49
      %53 = dma.smem_to_hbm [#allocation2], 16, %s2, [#allocation3]
    $region21: #{custom_loss_forward.1} parent=1 // pred_fallthru
      _
    // Predicated region
    $region22: #{custom_loss_forward.1} parent=1 // pred_check
      _
    $region23: #{custom_loss_forward.1} parent=1 // pred_check_branch
      %55 = sbr.rel (0) target = $region25
    $region24: #{custom_loss_forward.1} parent=1 // pred_region
      %56 = dma.done [#allocation3], 16
    $region25: #{custom_loss_forward.1} parent=1 // pred_fallthru
      _
    %57 = sfence
    %58 = vsyncpa [#allocation3], 1

</llo_original>
